<compile_context>
chip_gen: v7x
topology: tpu7x:2x2x1
jax: 0.10.0
libtpu: 0.0.40
codegen_flags: <defaults>
</compile_context>

<pallas_src>
import functools

import jax
import jax.numpy as jnp
import numpy as np
from jax.experimental import pallas as pl
from jax.experimental.pallas import tpu as pltpu


def _round_up(x, m):
    return (x + m - 1) // m * m


# 3x3 tap order (kh, kw); centre tap is index 4.
_TAPS = [(kh, kw) for kh in range(3) for kw in range(3)]


def _make_mask_table(H, W, NB):
    """(8, NB*H*W) 0/1 table; row r = boundary mask of the r-th non-centre tap,
    tiled over the NB samples stacked along lanes."""
    HW = H * W
    hh = np.arange(HW) // W
    ww = np.arange(HW) % W
    rows = []
    for kh, kw in _TAPS:
        dh, dw = kh - 1, kw - 1
        if dh == 0 and dw == 0:
            continue
        ok = np.ones(HW, dtype=bool)
        if dh == -1:
            ok &= hh >= 1
        elif dh == 1:
            ok &= hh <= H - 2
        if dw == -1:
            ok &= ww >= 1
        elif dw == 1:
            ok &= ww <= W - 2
        rows.append(ok.astype(np.float32))
    tab = np.stack(rows, axis=0)                     # (8, HW)
    return np.tile(tab, (1, NB))                     # (8, NB*HW)


def _make_kernel(H, W, NB, Cin_p, Cout, Cp, slope, eps, wide_k1, wide_k2, cdt):
    HW = H * W
    L = NB * HW
    half = Cout // 2
    hin_aligned = half > 0 and half % 8 == 0

    def kernel(x_ref, mask_ref, w1_ref, w2_ref, aff_ref, out_ref):
        mask = mask_ref[...]                         # (8, L), hoisted from host

        def shifted(src, t):
            kh, kw = _TAPS[t]
            dh, dw = kh - 1, kw - 1
            if dh == 0 and dw == 0:
                return src
            s = dh * W + dw
            rolled = pltpu.roll(src, shift=(-s) % L, axis=1)
            r = t if t < 4 else t - 1                # mask row (centre skipped)
            return rolled * mask[r:r + 1, :]

        def conv3x3(src, w_ref, wide):
            if wide:
                # Tiny per-tap K: single wide-K MXU matmul over stacked taps.
                col = jnp.concatenate([shifted(src, t) for t in range(9)],
                                      axis=0)
                return jnp.dot(w_ref[...], col,
                               preferred_element_type=jnp.float32)
            # MXU-friendly per-tap K (>=64): accumulate 9 matmuls, never
            # materialize the 9x im2col slab (VMEM-friendly at real shapes).
            acc = None
            for t in range(9):
                part = jnp.dot(w_ref[t], shifted(src, t),
                               preferred_element_type=jnp.float32)
                acc = part if acc is None else acc + part
            return acc

        # ---- conv_1 (3x3) + folded 1x1 identity ------------------------------
        # rows [0:Cp)  : conv_1 output (+ zero padding rows)
        # rows [Cp:2Cp): 1x1 identity output (+ zero padding rows)
        y = conv3x3(x_ref[...], w1_ref, wide_k1)                 # (2Cp, L) f32
        y = y + aff_ref[:, 0:1]                                  # [b1 ; bid]

        ident = y[Cp:2 * Cp, :]                                  # aligned slice
        yc = y[0:Cp, :]                                          # conv rows
        yc = jnp.where(yc >= 0, yc, slope * yc)                  # LeakyReLU

        # ---- Half-Instance-Norm on the first `half` conv rows ----------------
        def _norm(v):
            if NB == 1:
                mu = jnp.mean(v, axis=1, keepdims=True)
                var = jnp.mean(jnp.square(v - mu), axis=1, keepdims=True)
                return (v - mu) * jax.lax.rsqrt(var + eps)
            v3 = v.reshape(v.shape[0], NB, HW)       # per-sample lane segments
            mu = jnp.mean(v3, axis=2, keepdims=True)
            var = jnp.mean(jnp.square(v3 - mu), axis=2, keepdims=True)
            return ((v3 - mu) * jax.lax.rsqrt(var + eps)).reshape(v.shape[0], L)

        if half == 0:
            resi_c = yc
        elif hin_aligned:
            # Aligned prefix slice: stats / rsqrt / affine only on HIN rows.
            yn = _norm(yc[0:half]) * aff_ref[0:half, 1:2] + aff_ref[0:half, 2:3]
            resi_c = jnp.concatenate([yn, yc[half:Cp]], axis=0)
        else:
            # Tiny-channel fallback (half not sublane-aligned): normalize the
            # Cp conv rows (identity rows already excluded) and select.
            yn = _norm(yc) * aff_ref[0:Cp, 1:2] + aff_ref[0:Cp, 2:3]
            row = jax.lax.broadcasted_iota(jnp.int32, (Cp, L), 0)
            resi_c = jnp.where(row < half, yn, yc)

        # ---- conv_2 (3x3) over only the Cp conv/HIN rows ---------------------
        rc = resi_c if cdt == jnp.float32 else resi_c.astype(cdt)
        y2 = conv3x3(rc, w2_ref, wide_k2)                        # (Cp, L) f32
        y2 = y2 + aff_ref[0:Cp, 3:4]                             # b2
        y2 = jnp.where(y2 >= 0, y2, slope * y2)

        # ---- residual add with the identity rows; full-sublane store ---------
        out_ref[...] = (y2 + ident).astype(out_ref.dtype)

    return kernel


def _pack_params(params, Cin, Cout, Cin_p, Cp, wide_k1, wide_k2, cdt):
    half = Cout // 2
    R = 2 * Cp
    w1 = params["w1"].astype(jnp.float32)        # (3,3,Cin,Cout)   HWIO
    w2 = params["w2"].astype(jnp.float32)        # (3,3,Cout,Cout)  HWIO
    wid = params["wid"].astype(jnp.float32)      # (Cin, Cout)

    # conv_1 weights in rows [0:Cout); 1x1 identity folded onto the centre tap
    # in rows [Cp:Cp+Cout).  Per-tap layout (9, 2Cp, Cin_p).
    w1t = jnp.zeros((9, R, Cin_p), jnp.float32)
    for t, (kh, kw) in enumerate(_TAPS):
        w1t = w1t.at[t, 0:Cout, 0:Cin].set(jnp.transpose(w1[kh, kw], (1, 0)))
    w1t = w1t.at[4, Cp:Cp + Cout, 0:Cin].set(jnp.transpose(wid, (1, 0)))

    # conv_2 consumes only the Cp conv/HIN rows -> (9, Cp, Cp); the all-zero
    # identity-row columns of v2 are gone.
    w2t = jnp.zeros((9, Cp, Cp), jnp.float32)
    for t, (kh, kw) in enumerate(_TAPS):
        w2t = w2t.at[t, 0:Cout, 0:Cout].set(jnp.transpose(w2[kh, kw], (1, 0)))

    # Wide-K path flattens taps into the contraction axis.
    w1p = jnp.transpose(w1t, (1, 0, 2)).reshape(R, 9 * Cin_p) if wide_k1 else w1t
    w2p = jnp.transpose(w2t, (1, 0, 2)).reshape(Cp, 9 * Cp) if wide_k2 else w2t

    # Per-row affine table, columns = [bias, gamma, beta, b2].
    aff = jnp.zeros((R, 4), jnp.float32)
    aff = aff.at[0:Cout, 0].set(params["b1"])
    aff = aff.at[Cp:Cp + Cout, 0].set(params["bid"])
    aff = aff.at[:, 1].set(1.0)
    aff = aff.at[0:half, 1].set(params["gamma"])
    aff = aff.at[0:half, 2].set(params["beta"])
    aff = aff.at[0:Cout, 3].set(params["b2"])
    return w1p.astype(cdt), w2p.astype(cdt), aff


def _choose_block_n(N, HW):
    # Keep the 'parallel' grid axis at >=2 iterations when possible (two TCs on
    # v7x); otherwise block as many samples per step as divisibility allows.
    block_n = 1
    for nb in (8, 4, 2):
        if N % nb == 0 and N // nb >= 2:
            block_n = nb
            break
    if (block_n * HW) % 128 != 0:     # lane block must be 128-divisible ...
        block_n = N                   # ... or cover the full lane axis
    return block_n


@functools.partial(jax.jit, static_argnames=("block_n", "use_bf16"))
def hin_res_block(x_nchw, params, block_n=None, use_bf16=False):
    """Forward pass of HinResBlock.  x_nchw: (N, Cin, H, W) float32 (NCHW)."""
    x = x_nchw.astype(jnp.float32)
    N, Cin, H, W = x.shape
    HW = H * W
    Cout = params["b1"].shape[0]
    Cin_p = _round_up(Cin, 8)
    Cp = _round_up(Cout, 8)
    if block_n is None:
        block_n = _choose_block_n(N, HW)
    NB = block_n
    L = NB * HW

    # Optional bf16 storage: native-bf16 MXU, half the HBM/VMEM traffic; f32
    # accumulation and f32 HIN statistics.  Off by default (exact f32 parity).
    cdt = jnp.bfloat16 if use_bf16 else jnp.float32

    # Per-tap K >= 64 is already MXU-friendly -> per-tap accumulation; the
    # wide-K im2col concat is only used for tiny-channel configs.
    wide_k1 = Cin_p < 64
    wide_k2 = Cp < 64

    # ---- wrapper-side layout plumbing: NCHW -> (C, N*H*W), channel zero-pad --
    x_t = jnp.transpose(x, (1, 0, 2, 3)).reshape(Cin, N * HW)
    x_t = jnp.pad(x_t, ((0, Cin_p - Cin), (0, 0))).astype(cdt)

    mask_tab = jnp.asarray(_make_mask_table(H, W, NB), dtype=cdt)   # (8, L)
    w1p, w2p, aff = _pack_params(params, Cin, Cout, Cin_p, Cp,
                                 wide_k1, wide_k2, cdt)

    kernel = _make_kernel(H, W, NB, Cin_p, Cout, Cp, 0.2, 1e-5,
                          wide_k1, wide_k2, cdt)

    def const_spec(a):
        nd = a.ndim
        return pl.BlockSpec(a.shape, lambda j: (0,) * nd)

    out_flat = pl.pallas_call(
        kernel,
        out_shape=jax.ShapeDtypeStruct((Cp, N * HW), jnp.float32),
        grid=(N // NB,),
        in_specs=[
            pl.BlockSpec((Cin_p, L), lambda j: (0, j)),   # input slab
            const_spec(mask_tab),                         # boundary mask table
            const_spec(w1p),                              # conv1 + identity
            const_spec(w2p),                              # conv2 (conv rows only)
            const_spec(aff),                              # bias/gamma/beta/b2
        ],
        out_specs=pl.BlockSpec((Cp, L), lambda j: (0, j)),  # lane-dense output
        compiler_params=pltpu.CompilerParams(
            dimension_semantics=("parallel",)),
    )(x_t, mask_tab, w1p, w2p, aff)

    # TODO(synk): for production HINet sizes (H=W=256, C=64) add a spatial
    # 'parallel' grid axis over H*W lane tiles with a 1-row halo (overlapping
    # element-offset blocks or a manual-DMA halo fetch) and raise
    # vmem_limit_bytes; at these test shapes one image per step fits VMEM.

    out = out_flat.reshape(Cp, N, H, W)
    return jnp.transpose(out, (1, 0, 2, 3))[:, 0:Cout]      # back to NCHW


def reference_forward(x_nchw, params, slope=0.2, eps=1e-5):
    """Pure-JAX reference (mirrors the PyTorch module exactly)."""
    x = jnp.transpose(x_nchw, (0, 2, 3, 1)).astype(jnp.float32)
    dn = ("NHWC", "HWIO", "NHWC")
    lrelu = lambda v: jnp.where(v >= 0, v, slope * v)

    y1 = jax.lax.conv_general_dilated(x, params["w1"], (1, 1), "SAME",
                                      dimension_numbers=dn) + params["b1"]
    y1 = lrelu(y1)
    half = params["b1"].shape[0] // 2
    h1, h2 = y1[..., :half], y1[..., half:]
    mu = jnp.mean(h1, axis=(1, 2), keepdims=True)
    var = jnp.mean((h1 - mu) ** 2, axis=(1, 2), keepdims=True)
    h1 = (h1 - mu) / jnp.sqrt(var + eps) * params["gamma"] + params["beta"]
    resi = jnp.concatenate([h1, h2], axis=-1)
    y2 = jax.lax.conv_general_dilated(resi, params["w2"], (1, 1), "SAME",
                                      dimension_numbers=dn) + params["b2"]
    y2 = lrelu(y2)
    ident = jnp.einsum("nhwi,io->nhwo", x, params["wid"]) + params["bid"]
    out = ident + y2
    return jnp.transpose(out, (0, 3, 1, 2))


def init_params(key, in_size, out_size):
    ks = jax.random.split(key, 8)
    half = out_size // 2
    s = 0.1
    return {
        "w1": s * jax.random.normal(ks[0], (3, 3, in_size, out_size), jnp.float32),
        "b1": s * jax.random.normal(ks[1], (out_size,), jnp.float32),
        "w2": s * jax.random.normal(ks[2], (3, 3, out_size, out_size), jnp.float32),
        "b2": s * jax.random.normal(ks[3], (out_size,), jnp.float32),
        "wid": s * jax.random.normal(ks[4], (in_size, out_size), jnp.float32),
        "bid": s * jax.random.normal(ks[5], (out_size,), jnp.float32),
        # InstanceNorm2d affine params (deterministic, non-trivial)
        "gamma": 1.0 + s * jax.random.normal(ks[6], (half,), jnp.float32),
        "beta": s * jax.random.normal(ks[7], (half,), jnp.float32),
    }


if __name__ == "__main__":
    key = jax.random.PRNGKey(0)
    k_x, k_p = jax.random.split(key)

    N, Cin, H, W = 2, 4, 16, 16          # in_size = out_size = 4
    Cout = 4
    x = jax.random.normal(k_x, (N, Cin, H, W), jnp.float32)
    params = init_params(k_p, Cin, Cout)

    out = jax.block_until_ready(hin_res_block(x, params))
    ref = jax.block_until_ready(reference_forward(x, params))

    np.testing.assert_allclose(np.asarray(out), np.asarray(ref),
                               rtol=2e-4, atol=2e-4)
    print("KERNEL_OK")
</pallas_src>

<mosaic_0001>
module attributes {stable_mosaic.version = 11 : i64} {
  func.func @kernel(%arg0: i32, %arg1: memref<8x256xf32, #tpu.memory_space<vmem>>, %arg2: memref<8x256xf32, #tpu.memory_space<vmem>>, %arg3: memref<16x72xf32, #tpu.memory_space<vmem>>, %arg4: memref<8x72xf32, #tpu.memory_space<vmem>>, %arg5: memref<16x4xf32, #tpu.memory_space<vmem>>, %arg6: memref<8x256xf32, #tpu.memory_space<vmem>>) attributes {dimension_semantics = [#tpu.dimension_semantics<parallel>], iteration_bounds = array<i64: 2>, scalar_prefetch = 0 : i64, scratch_operands = 0 : i64, tpu.core_type = #tpu.core_type<tc>, window_params = [{transform_indices = @transform_0, window_bounds = array<i64: 8, 256>}, {pipeline_mode = #tpu.pipeline_mode<synchronous>, transform_indices = @transform_1, window_bounds = array<i64: 8, 256>}, {pipeline_mode = #tpu.pipeline_mode<synchronous>, transform_indices = @transform_2, window_bounds = array<i64: 16, 72>}, {pipeline_mode = #tpu.pipeline_mode<synchronous>, transform_indices = @transform_3, window_bounds = array<i64: 8, 72>}, {pipeline_mode = #tpu.pipeline_mode<synchronous>, transform_indices = @transform_4, window_bounds = array<i64: 16, 4>}, {transform_indices = @transform_5, window_bounds = array<i64: 8, 256>}]} {
    %c0 = arith.constant 0 : index
    %c0_0 = arith.constant 0 : index
    %0 = vector.load %arg2[%c0, %c0_0] : memref<8x256xf32, #tpu.memory_space<vmem>>, vector<8x256xf32>
    %c0_1 = arith.constant 0 : index
    %c0_2 = arith.constant 0 : index
    %1 = vector.load %arg1[%c0_1, %c0_2] : memref<8x256xf32, #tpu.memory_space<vmem>>, vector<8x256xf32>
    %c17_i32 = arith.constant 17 : i32
    %2 = tpu.dynamic_rotate %1 by %c17_i32 dim 1 : vector<8x256xf32>, i32 -> vector<8x256xf32>
    %3 = vector.extract_strided_slice %0 {offsets = [0, 0], sizes = [1, 256], strides = [1, 1]} : vector<8x256xf32> to vector<1x256xf32>
    %4 = vector.broadcast %3 : vector<1x256xf32> to vector<8x256xf32>
    %5 = arith.mulf %2, %4 : vector<8x256xf32>
    %c16_i32 = arith.constant 16 : i32
    %6 = tpu.dynamic_rotate %1 by %c16_i32 dim 1 : vector<8x256xf32>, i32 -> vector<8x256xf32>
    %7 = vector.extract_strided_slice %0 {offsets = [1, 0], sizes = [1, 256], strides = [1, 1]} : vector<8x256xf32> to vector<1x256xf32>
    %8 = vector.broadcast %7 : vector<1x256xf32> to vector<8x256xf32>
    %9 = arith.mulf %6, %8 : vector<8x256xf32>
    %c15_i32 = arith.constant 15 : i32
    %10 = tpu.dynamic_rotate %1 by %c15_i32 dim 1 : vector<8x256xf32>, i32 -> vector<8x256xf32>
    %11 = vector.extract_strided_slice %0 {offsets = [2, 0], sizes = [1, 256], strides = [1, 1]} : vector<8x256xf32> to vector<1x256xf32>
    %12 = vector.broadcast %11 : vector<1x256xf32> to vector<8x256xf32>
    %13 = arith.mulf %10, %12 : vector<8x256xf32>
    %c1_i32 = arith.constant 1 : i32
    %14 = tpu.dynamic_rotate %1 by %c1_i32 dim 1 : vector<8x256xf32>, i32 -> vector<8x256xf32>
    %15 = vector.extract_strided_slice %0 {offsets = [3, 0], sizes = [1, 256], strides = [1, 1]} : vector<8x256xf32> to vector<1x256xf32>
    %16 = vector.broadcast %15 : vector<1x256xf32> to vector<8x256xf32>
    %17 = arith.mulf %14, %16 : vector<8x256xf32>
    %c255_i32 = arith.constant 255 : i32
    %18 = tpu.dynamic_rotate %1 by %c255_i32 dim 1 : vector<8x256xf32>, i32 -> vector<8x256xf32>
    %19 = vector.extract_strided_slice %0 {offsets = [4, 0], sizes = [1, 256], strides = [1, 1]} : vector<8x256xf32> to vector<1x256xf32>
    %20 = vector.broadcast %19 : vector<1x256xf32> to vector<8x256xf32>
    %21 = arith.mulf %18, %20 : vector<8x256xf32>
    %c241_i32 = arith.constant 241 : i32
    %22 = tpu.dynamic_rotate %1 by %c241_i32 dim 1 : vector<8x256xf32>, i32 -> vector<8x256xf32>
    %23 = vector.extract_strided_slice %0 {offsets = [5, 0], sizes = [1, 256], strides = [1, 1]} : vector<8x256xf32> to vector<1x256xf32>
    %24 = vector.broadcast %23 : vector<1x256xf32> to vector<8x256xf32>
    %25 = arith.mulf %22, %24 : vector<8x256xf32>
    %c240_i32 = arith.constant 240 : i32
    %26 = tpu.dynamic_rotate %1 by %c240_i32 dim 1 : vector<8x256xf32>, i32 -> vector<8x256xf32>
    %27 = vector.extract_strided_slice %0 {offsets = [6, 0], sizes = [1, 256], strides = [1, 1]} : vector<8x256xf32> to vector<1x256xf32>
    %28 = vector.broadcast %27 : vector<1x256xf32> to vector<8x256xf32>
    %29 = arith.mulf %26, %28 : vector<8x256xf32>
    %c239_i32 = arith.constant 239 : i32
    %30 = tpu.dynamic_rotate %1 by %c239_i32 dim 1 : vector<8x256xf32>, i32 -> vector<8x256xf32>
    %31 = vector.extract_strided_slice %0 {offsets = [7, 0], sizes = [1, 256], strides = [1, 1]} : vector<8x256xf32> to vector<1x256xf32>
    %32 = vector.broadcast %31 : vector<1x256xf32> to vector<8x256xf32>
    %33 = arith.mulf %30, %32 : vector<8x256xf32>
    %34 = tpu.concatenate %5, %9, %13, %17, %1, %21, %25, %29, %33 in 0 : vector<8x256xf32>, vector<8x256xf32>, vector<8x256xf32>, vector<8x256xf32>, vector<8x256xf32>, vector<8x256xf32>, vector<8x256xf32>, vector<8x256xf32>, vector<8x256xf32> -> vector<72x256xf32>
    %c0_3 = arith.constant 0 : index
    %c0_4 = arith.constant 0 : index
    %35 = vector.load %arg3[%c0_3, %c0_4] : memref<16x72xf32, #tpu.memory_space<vmem>>, vector<16x72xf32>
    %cst = arith.constant dense<0.000000e+00> : vector<16x256xf32>
    %36 = tpu.matmul %35, %34, %cst {dimension_numbers = #tpu.dot_dimension_numbers<[1], [0], [0], [1], [0, 0, 1, 1], [], []>} : vector<16x72xf32>, vector<72x256xf32>, vector<16x256xf32> -> vector<16x256xf32>
    %c0_5 = arith.constant 0 : index
    %c0_6 = arith.constant 0 : index
    %37 = vector.load %arg5[%c0_5, %c0_6] : memref<16x4xf32, #tpu.memory_space<vmem>>, vector<16x1xf32>
    %38 = vector.broadcast %37 : vector<16x1xf32> to vector<16x256xf32>
    %39 = arith.addf %36, %38 : vector<16x256xf32>
    %40 = vector.extract_strided_slice %39 {offsets = [8, 0], sizes = [8, 256], strides = [1, 1]} : vector<16x256xf32> to vector<8x256xf32>
    %41 = vector.extract_strided_slice %39 {offsets = [0, 0], sizes = [8, 256], strides = [1, 1]} : vector<16x256xf32> to vector<8x256xf32>
    %cst_7 = arith.constant 0.000000e+00 : f32
    %42 = vector.broadcast %cst_7 : f32 to vector<8x256xf32>
    %43 = arith.cmpf oge, %41, %42 : vector<8x256xf32>
    %cst_8 = arith.constant 2.000000e-01 : f32
    %44 = vector.broadcast %cst_8 : f32 to vector<8x256xf32>
    %45 = arith.mulf %44, %41 : vector<8x256xf32>
    %46 = arith.select %43, %41, %45 : vector<8x256xi1>, vector<8x256xf32>
    %cst_9 = arith.constant dense<0.000000e+00> : vector<8xf32>
    %47 = vector.multi_reduction <add>, %46, %cst_9 [1] : vector<8x256xf32> to vector<8xf32>
    %48 = vector.shape_cast %47 : vector<8xf32> to vector<8x1xf32>
    %cst_10 = arith.constant 2.560000e+02 : f32
    %49 = vector.broadcast %cst_10 : f32 to vector<8x1xf32>
    %50 = arith.divf %48, %49 : vector<8x1xf32>
    %51 = vector.broadcast %50 : vector<8x1xf32> to vector<8x256xf32>
    %52 = arith.subf %46, %51 : vector<8x256xf32>
    %53 = arith.mulf %52, %52 : vector<8x256xf32>
    %cst_11 = arith.constant dense<0.000000e+00> : vector<8xf32>
    %54 = vector.multi_reduction <add>, %53, %cst_11 [1] : vector<8x256xf32> to vector<8xf32>
    %55 = vector.shape_cast %54 : vector<8xf32> to vector<8x1xf32>
    %cst_12 = arith.constant 2.560000e+02 : f32
    %56 = vector.broadcast %cst_12 : f32 to vector<8x1xf32>
    %57 = arith.divf %55, %56 : vector<8x1xf32>
    %58 = vector.broadcast %50 : vector<8x1xf32> to vector<8x256xf32>
    %59 = arith.subf %46, %58 : vector<8x256xf32>
    %cst_13 = arith.constant 9.99999974E-6 : f32
    %60 = vector.broadcast %cst_13 : f32 to vector<8x1xf32>
    %61 = arith.addf %57, %60 : vector<8x1xf32>
    %62 = math.rsqrt %61 : vector<8x1xf32>
    %63 = vector.broadcast %62 : vector<8x1xf32> to vector<8x256xf32>
    %64 = arith.mulf %59, %63 : vector<8x256xf32>
    %c0_14 = arith.constant 0 : index
    %c1 = arith.constant 1 : index
    %65 = vector.load %arg5[%c0_14, %c1] : memref<16x4xf32, #tpu.memory_space<vmem>>, vector<8x1xf32>
    %66 = vector.broadcast %65 : vector<8x1xf32> to vector<8x256xf32>
    %67 = arith.mulf %64, %66 : vector<8x256xf32>
    %c0_15 = arith.constant 0 : index
    %c2 = arith.constant 2 : index
    %68 = vector.load %arg5[%c0_15, %c2] : memref<16x4xf32, #tpu.memory_space<vmem>>, vector<8x1xf32>
    %69 = vector.broadcast %68 : vector<8x1xf32> to vector<8x256xf32>
    %70 = arith.addf %67, %69 : vector<8x256xf32>
    %71 = tpu.iota {dimensions = array<i32: 0>} : vector<8x256xi32>
    %c2_i32 = arith.constant 2 : i32
    %72 = vector.broadcast %c2_i32 : i32 to vector<8x256xi32>
    %73 = arith.cmpi slt, %71, %72 : vector<8x256xi32>
    %74 = arith.select %73, %70, %46 : vector<8x256xi1>, vector<8x256xf32>
    %c17_i32_16 = arith.constant 17 : i32
    %75 = tpu.dynamic_rotate %74 by %c17_i32_16 dim 1 : vector<8x256xf32>, i32 -> vector<8x256xf32>
    %76 = vector.extract_strided_slice %0 {offsets = [0, 0], sizes = [1, 256], strides = [1, 1]} : vector<8x256xf32> to vector<1x256xf32>
    %77 = vector.broadcast %76 : vector<1x256xf32> to vector<8x256xf32>
    %78 = arith.mulf %75, %77 : vector<8x256xf32>
    %c16_i32_17 = arith.constant 16 : i32
    %79 = tpu.dynamic_rotate %74 by %c16_i32_17 dim 1 : vector<8x256xf32>, i32 -> vector<8x256xf32>
    %80 = vector.extract_strided_slice %0 {offsets = [1, 0], sizes = [1, 256], strides = [1, 1]} : vector<8x256xf32> to vector<1x256xf32>
    %81 = vector.broadcast %80 : vector<1x256xf32> to vector<8x256xf32>
    %82 = arith.mulf %79, %81 : vector<8x256xf32>
    %c15_i32_18 = arith.constant 15 : i32
    %83 = tpu.dynamic_rotate %74 by %c15_i32_18 dim 1 : vector<8x256xf32>, i32 -> vector<8x256xf32>
    %84 = vector.extract_strided_slice %0 {offsets = [2, 0], sizes = [1, 256], strides = [1, 1]} : vector<8x256xf32> to vector<1x256xf32>
    %85 = vector.broadcast %84 : vector<1x256xf32> to vector<8x256xf32>
    %86 = arith.mulf %83, %85 : vector<8x256xf32>
    %c1_i32_19 = arith.constant 1 : i32
    %87 = tpu.dynamic_rotate %74 by %c1_i32_19 dim 1 : vector<8x256xf32>, i32 -> vector<8x256xf32>
    %88 = vector.extract_strided_slice %0 {offsets = [3, 0], sizes = [1, 256], strides = [1, 1]} : vector<8x256xf32> to vector<1x256xf32>
    %89 = vector.broadcast %88 : vector<1x256xf32> to vector<8x256xf32>
    %90 = arith.mulf %87, %89 : vector<8x256xf32>
    %c255_i32_20 = arith.constant 255 : i32
    %91 = tpu.dynamic_rotate %74 by %c255_i32_20 dim 1 : vector<8x256xf32>, i32 -> vector<8x256xf32>
    %92 = vector.extract_strided_slice %0 {offsets = [4, 0], sizes = [1, 256], strides = [1, 1]} : vector<8x256xf32> to vector<1x256xf32>
    %93 = vector.broadcast %92 : vector<1x256xf32> to vector<8x256xf32>
    %94 = arith.mulf %91, %93 : vector<8x256xf32>
    %c241_i32_21 = arith.constant 241 : i32
    %95 = tpu.dynamic_rotate %74 by %c241_i32_21 dim 1 : vector<8x256xf32>, i32 -> vector<8x256xf32>
    %96 = vector.extract_strided_slice %0 {offsets = [5, 0], sizes = [1, 256], strides = [1, 1]} : vector<8x256xf32> to vector<1x256xf32>
    %97 = vector.broadcast %96 : vector<1x256xf32> to vector<8x256xf32>
    %98 = arith.mulf %95, %97 : vector<8x256xf32>
    %c240_i32_22 = arith.constant 240 : i32
    %99 = tpu.dynamic_rotate %74 by %c240_i32_22 dim 1 : vector<8x256xf32>, i32 -> vector<8x256xf32>
    %100 = vector.extract_strided_slice %0 {offsets = [6, 0], sizes = [1, 256], strides = [1, 1]} : vector<8x256xf32> to vector<1x256xf32>
    %101 = vector.broadcast %100 : vector<1x256xf32> to vector<8x256xf32>
    %102 = arith.mulf %99, %101 : vector<8x256xf32>
    %c239_i32_23 = arith.constant 239 : i32
    %103 = tpu.dynamic_rotate %74 by %c239_i32_23 dim 1 : vector<8x256xf32>, i32 -> vector<8x256xf32>
    %104 = vector.extract_strided_slice %0 {offsets = [7, 0], sizes = [1, 256], strides = [1, 1]} : vector<8x256xf32> to vector<1x256xf32>
    %105 = vector.broadcast %104 : vector<1x256xf32> to vector<8x256xf32>
    %106 = arith.mulf %103, %105 : vector<8x256xf32>
    %107 = tpu.concatenate %78, %82, %86, %90, %74, %94, %98, %102, %106 in 0 : vector<8x256xf32>, vector<8x256xf32>, vector<8x256xf32>, vector<8x256xf32>, vector<8x256xf32>, vector<8x256xf32>, vector<8x256xf32>, vector<8x256xf32>, vector<8x256xf32> -> vector<72x256xf32>
    %c0_24 = arith.constant 0 : index
    %c0_25 = arith.constant 0 : index
    %108 = vector.load %arg4[%c0_24, %c0_25] : memref<8x72xf32, #tpu.memory_space<vmem>>, vector<8x72xf32>
    %cst_26 = arith.constant dense<0.000000e+00> : vector<8x256xf32>
    %109 = tpu.matmul %108, %107, %cst_26 {dimension_numbers = #tpu.dot_dimension_numbers<[1], [0], [0], [1], [0, 0, 1, 1], [], []>} : vector<8x72xf32>, vector<72x256xf32>, vector<8x256xf32> -> vector<8x256xf32>
    %c0_27 = arith.constant 0 : index
    %c3 = arith.constant 3 : index
    %110 = vector.load %arg5[%c0_27, %c3] : memref<16x4xf32, #tpu.memory_space<vmem>>, vector<8x1xf32>
    %111 = vector.broadcast %110 : vector<8x1xf32> to vector<8x256xf32>
    %112 = arith.addf %109, %111 : vector<8x256xf32>
    %cst_28 = arith.constant 0.000000e+00 : f32
    %113 = vector.broadcast %cst_28 : f32 to vector<8x256xf32>
    %114 = arith.cmpf oge, %112, %113 : vector<8x256xf32>
    %cst_29 = arith.constant 2.000000e-01 : f32
    %115 = vector.broadcast %cst_29 : f32 to vector<8x256xf32>
    %116 = arith.mulf %115, %112 : vector<8x256xf32>
    %117 = arith.select %114, %112, %116 : vector<8x256xi1>, vector<8x256xf32>
    %118 = arith.addf %117, %40 : vector<8x256xf32>
    %c0_30 = arith.constant 0 : index
    %c0_31 = arith.constant 0 : index
    %119 = vector.load %arg6[%c0_30, %c0_31] : memref<8x256xf32, #tpu.memory_space<vmem>>, vector<8x256xf32>
    tpu.vector_store %arg6[%c0_30, %c0_31], %118 {strides = array<i32>} : memref<8x256xf32, #tpu.memory_space<vmem>>, vector<8x256xf32>,
    return
  }
  func.func @transform_0(%arg0: i32) -> (i32, i32) {
    %c0_i32 = arith.constant 0 : i32
    %c0_i32_0 = arith.constant 0 : i32
    return %c0_i32, %arg0 : i32, i32
  }
  func.func @transform_1(%arg0: i32) -> (i32, i32) {
    %c0_i32 = arith.constant 0 : i32
    %c0_i32_0 = arith.constant 0 : i32
    %c0_i32_1 = arith.constant 0 : i32
    return %c0_i32, %c0_i32_0 : i32, i32
  }
  func.func @transform_2(%arg0: i32) -> (i32, i32) {
    %c0_i32 = arith.constant 0 : i32
    %c0_i32_0 = arith.constant 0 : i32
    %c0_i32_1 = arith.constant 0 : i32
    return %c0_i32, %c0_i32_0 : i32, i32
  }
  func.func @transform_3(%arg0: i32) -> (i32, i32) {
    %c0_i32 = arith.constant 0 : i32
    %c0_i32_0 = arith.constant 0 : i32
    %c0_i32_1 = arith.constant 0 : i32
    return %c0_i32, %c0_i32_0 : i32, i32
  }
  func.func @transform_4(%arg0: i32) -> (i32, i32) {
    %c0_i32 = arith.constant 0 : i32
    %c0_i32_0 = arith.constant 0 : i32
    %c0_i32_1 = arith.constant 0 : i32
    return %c0_i32, %c0_i32_0 : i32, i32
  }
  func.func @transform_5(%arg0: i32) -> (i32, i32) {
    %c0_i32 = arith.constant 0 : i32
    %c0_i32_0 = arith.constant 0 : i32
    return %c0_i32, %arg0 : i32, i32
  }
}

</mosaic_0001>

<llo_original>
// kernel: hin_res_block.1
$region0: #{hin_res_block.1}
  #allocation0 [shape = 'u32[]', space=smem, size = 0x4, offset = 0x4, fixed_abs, tag = 'smem constant byte address 0x4 - core index']
  #allocation1 [shape = 'u32[144,128]{1,0:T(1,128)}', space=vmem, size = 0x12000, scoped, tag = 'internal scratch']
  %s0 = inlined_call_operand.vmem [shape: f32[8,512], index: 0, kind: input, shape index: {}]
  %s1 = inlined_call_operand.vmem [shape: f32[8,256], index: 1, kind: input, shape index: {}]
  %s2 = inlined_call_operand.vmem [shape: f32[16,72], index: 2, kind: input, shape index: {}]
  %s3 = inlined_call_operand.vmem [shape: f32[8,72], index: 3, kind: input, shape index: {}]
  %s4 = inlined_call_operand.vmem [shape: f32[16,4], index: 4, kind: input, shape index: {}]
  %s5 = inlined_call_operand.vmem [shape: f32[8,512], index: 5, kind: output, shape index: {}]
  %s6 = sld [smem:[#allocation0]]
  $region53: #{hin_res_block.1} parent=0
    _
  %s8 = ssub.s32 1, %s6
  %s9 = scalar_select 0, %s8, %s6
  loop: start=0, step=1, limit=4
  $region2: #{hin_res_block.1} parent=0 // loop_pre_header
    _
  $region3: #{hin_res_block.1} parent=0 // loop_header
    %s11 = sphi 0, %s15
    %p12 = scmp.ge.s32.totalorder %s11, 4
    %s21 = sphi 0, %s23
    %s24 = sphi 0, %s21
    %s25 = sphi 0, %s24
    %s41 = sphi 0, %s25
    %s45 = sphi 0, %s45
    %s47 = sphi 0, %s45
    %s48 = sphi 0, %s47
    %s62 = sphi 0, %s48
    %s66 = sphi 0, %s66
    %s68 = sphi 0, %s66
    %s69 = sphi 0, %s68
    %s83 = sphi 0, %s69
    %s87 = sphi 0, %s87
    %s89 = sphi 0, %s87
    %s90 = sphi 0, %s89
    %s104 = sphi 0, %s90
    %s108 = sphi 0, %s108
    %s110 = sphi 0, %s108
    %s111 = sphi 0, %s110
    %s125 = sphi 0, %s111
    %s131 = sphi 0, %s133
    %s134 = sphi 0, %s131
    %s135 = sphi 0, %s134
    %s151 = sphi 0, %s135
  $region4: #{hin_res_block.1} parent=0 // loop_header_branch
    %14 = sbr.rel (%p12) target = $region8
  $region5: #{hin_res_block.1} parent=0 // loop_body
    %s16 = ssub.s32 %s11, 1
    %s17 = ssub.s32 %s11, 2
    %s18 = sadd.s32 %s11, 1
    %s19 = ssub.s32 %s11, %s18
    %p20 = scmp.eq.s32.totalorder %s19, 0
    %s22 = sadd.s32 %s21, 1
    %s23 = scalar_select %p20, %s21, %s22
    %p26 = pneg %p20
    %p27 = scmp.eq.s32.totalorder %s11, 1
    %p28 = por %p26, %p27
    %p29 = scmp.ne.s32.totalorder %s21, %s24
    %p30 = scmp.eq.s32.totalorder %s11, 0
    %p31 = por %p29, %p30
    %p32 = scmp.ne.s32.totalorder %s21, %s24
    %p33 = scmp.eq.s32.totalorder %s16, 1
    %p34 = por %p32, %p33
    %p35 = scmp.ne.s32.totalorder %s24, %s25
    %p36 = scmp.eq.s32.totalorder %s16, 0
    %p37 = por %p35, %p36
    %p38 = scmp.ne.s32.totalorder %s24, %s25
    %p39 = scmp.eq.s32.totalorder %s17, 1
    %p40 = por %p38, %p39
    %p42 = scmp.ne.s32.totalorder %s25, %s41
    %p43 = scmp.eq.s32.totalorder %s17, 0
    %p44 = por %p42, %p43
    %s46 = sadd.s32 %s45, 1
    %p49 = scmp.eq.s32.totalorder %s11, 1
    %p50 = scmp.ne.s32.totalorder %s45, %s47
    %p51 = scmp.eq.s32.totalorder %s11, 0
    %p52 = por %p50, %p51
    %p53 = scmp.ne.s32.totalorder %s45, %s47
    %p54 = scmp.eq.s32.totalorder %s16, 1
    %p55 = por %p53, %p54
    %p56 = scmp.ne.s32.totalorder %s47, %s48
    %p57 = scmp.eq.s32.totalorder %s16, 0
    %p58 = por %p56, %p57
    %p59 = scmp.ne.s32.totalorder %s47, %s48
    %p60 = scmp.eq.s32.totalorder %s17, 1
    %p61 = por %p59, %p60
    %p63 = scmp.ne.s32.totalorder %s48, %s62
    %p64 = scmp.eq.s32.totalorder %s17, 0
    %p65 = por %p63, %p64
    %s67 = sadd.s32 %s66, 1
    %p70 = scmp.eq.s32.totalorder %s11, 1
    %p71 = scmp.ne.s32.totalorder %s66, %s68
    %p72 = scmp.eq.s32.totalorder %s11, 0
    %p73 = por %p71, %p72
    %p74 = scmp.ne.s32.totalorder %s66, %s68
    %p75 = scmp.eq.s32.totalorder %s16, 1
    %p76 = por %p74, %p75
    %p77 = scmp.ne.s32.totalorder %s68, %s69
    %p78 = scmp.eq.s32.totalorder %s16, 0
    %p79 = por %p77, %p78
    %p80 = scmp.ne.s32.totalorder %s68, %s69
    %p81 = scmp.eq.s32.totalorder %s17, 1
    %p82 = por %p80, %p81
    %p84 = scmp.ne.s32.totalorder %s69, %s83
    %p85 = scmp.eq.s32.totalorder %s17, 0
    %p86 = por %p84, %p85
    %s88 = sadd.s32 %s87, 1
    %p91 = scmp.eq.s32.totalorder %s11, 1
    %p92 = scmp.ne.s32.totalorder %s87, %s89
    %p93 = scmp.eq.s32.totalorder %s11, 0
    %p94 = por %p92, %p93
    %p95 = scmp.ne.s32.totalorder %s87, %s89
    %p96 = scmp.eq.s32.totalorder %s16, 1
    %p97 = por %p95, %p96
    %p98 = scmp.ne.s32.totalorder %s89, %s90
    %p99 = scmp.eq.s32.totalorder %s16, 0
    %p100 = por %p98, %p99
    %p101 = scmp.ne.s32.totalorder %s89, %s90
    %p102 = scmp.eq.s32.totalorder %s17, 1
    %p103 = por %p101, %p102
    %p105 = scmp.ne.s32.totalorder %s90, %s104
    %p106 = scmp.eq.s32.totalorder %s17, 0
    %p107 = por %p105, %p106
    %s109 = sadd.s32 %s108, 1
    %p112 = scmp.eq.s32.totalorder %s11, 1
    %p113 = scmp.ne.s32.totalorder %s108, %s110
    %p114 = scmp.eq.s32.totalorder %s11, 0
    %p115 = por %p113, %p114
    %p116 = scmp.ne.s32.totalorder %s108, %s110
    %p117 = scmp.eq.s32.totalorder %s16, 1
    %p118 = por %p116, %p117
    %p119 = scmp.ne.s32.totalorder %s110, %s111
    %p120 = scmp.eq.s32.totalorder %s16, 0
    %p121 = por %p119, %p120
    %p122 = scmp.ne.s32.totalorder %s110, %s111
    %p123 = scmp.eq.s32.totalorder %s17, 1
    %p124 = por %p122, %p123
    %p126 = scmp.ne.s32.totalorder %s111, %s125
    %p127 = scmp.eq.s32.totalorder %s17, 0
    %p128 = por %p126, %p127
    %s129 = ssub.s32 %s11, %s18
    %p130 = scmp.eq.s32.totalorder %s129, 0
    %s132 = sadd.s32 %s131, 1
    %s133 = scalar_select %p130, %s131, %s132
    %p136 = pneg %p130
    %p137 = scmp.eq.s32.totalorder %s11, 1
    %p138 = por %p136, %p137
    %p139 = scmp.ne.s32.totalorder %s131, %s134
    %p140 = scmp.eq.s32.totalorder %s11, 0
    %p141 = por %p139, %p140
    %p142 = scmp.ne.s32.totalorder %s131, %s134
    %p143 = scmp.eq.s32.totalorder %s16, 1
    %p144 = por %p142, %p143
    %p145 = scmp.ne.s32.totalorder %s134, %s135
    %p146 = scmp.eq.s32.totalorder %s16, 0
    %p147 = por %p145, %p146
    %p148 = scmp.ne.s32.totalorder %s134, %s135
    %p149 = scmp.eq.s32.totalorder %s17, 1
    %p150 = por %p148, %p149
    %p152 = scmp.ne.s32.totalorder %s135, %s151
    %p153 = scmp.eq.s32.totalorder %s17, 0
    %p154 = por %p152, %p153
    %p155 = scmp.le.s32.totalorder 1, %s11
    %p156 = scmp.lt.s32.totalorder %s11, 3
    %p157 = pnand %p155, %p156
    %p158 = pneg %p157
    // Predicated region
    $region9: #{hin_res_block.1} parent=5 // pred_check
      _
    $region10: #{hin_res_block.1} parent=5 // pred_check_branch
      %160 = sbr.rel (%p157) target = $region12
    $region11: #{hin_res_block.1} parent=5 // pred_region
      %s161 = ssub.s32 %s11, 1
      // Predicated region
      $region13: #{hin_res_block.1} parent=11 // pred_check
        %p162 = pneg %p58
      $region14: #{hin_res_block.1} parent=11 // pred_check_branch
        %164 = sbr.rel (%p162) target = $region16
      $region15: #{hin_res_block.1} parent=11 // pred_region
        _
      $region16: #{hin_res_block.1} parent=11 // pred_fallthru
        _
      // Predicated region
      $region17: #{hin_res_block.1} parent=11 // pred_check
        %p165 = pneg %p79
      $region18: #{hin_res_block.1} parent=11 // pred_check_branch
        %167 = sbr.rel (%p165) target = $region20
      $region19: #{hin_res_block.1} parent=11 // pred_region
        _
      $region20: #{hin_res_block.1} parent=11 // pred_fallthru
        _
      // Predicated region
      $region21: #{hin_res_block.1} parent=11 // pred_check
        %p168 = pneg %p100
      $region22: #{hin_res_block.1} parent=11 // pred_check_branch
        %170 = sbr.rel (%p168) target = $region24
      $region23: #{hin_res_block.1} parent=11 // pred_region
        _
      $region24: #{hin_res_block.1} parent=11 // pred_fallthru
        _
      // Predicated region
      $region25: #{hin_res_block.1} parent=11 // pred_check
        %p171 = pneg %p121
      $region26: #{hin_res_block.1} parent=11 // pred_check_branch
        %173 = sbr.rel (%p171) target = $region28
      $region27: #{hin_res_block.1} parent=11 // pred_region
        _
      $region28: #{hin_res_block.1} parent=11 // pred_fallthru
        _
    $region12: #{hin_res_block.1} parent=5 // pred_fallthru
      _
    %p174 = scmp.lt.s32.totalorder %s11, 2
    // Predicated region
    $region29: #{hin_res_block.1} parent=5 // pred_check
      %p175 = pneg %p174
    $region30: #{hin_res_block.1} parent=5 // pred_check_branch
      %177 = sbr.rel (%p175) target = $region32
    $region31: #{hin_res_block.1} parent=5 // pred_region
      // Predicated region
      $region33: #{hin_res_block.1} parent=31 // pred_check
        %p178 = pneg %p31
      $region34: #{hin_res_block.1} parent=31 // pred_check_branch
        %180 = sbr.rel (%p178) target = $region36
      $region35: #{hin_res_block.1} parent=31 // pred_region
        %s181 = smul.u32 2, %s11
        %p182 = scmp.lt.s32.totalorder %s181, 3
        %s183 = scalar_select %p182, %s181, 3
        %s184 = smul.addr %s183, 8
        %s185 = scalar_lea.vmem %s0, %s184
        %s186 = smul.u32 2, %s11
      $region36: #{hin_res_block.1} parent=31 // pred_fallthru
        _
    $region32: #{hin_res_block.1} parent=5 // pred_fallthru
      _
    %p187 = scmp.le.s32.totalorder 1, %s11
    %p188 = scmp.lt.s32.totalorder %s11, 3
    %p189 = pnand %p187, %p188
    %p190 = pneg %p189
    // Predicated region
    $region37: #{hin_res_block.1} parent=5 // pred_check
      _
    $region38: #{hin_res_block.1} parent=5 // pred_check_branch
      %192 = sbr.rel (%p189) target = $region40
    $region39: #{hin_res_block.1} parent=5 // pred_region
      %s193 = ssub.s32 %s11, 1
      %s194 = smul.u32 2, %s16
      %p195 = scmp.lt.s32.totalorder %s194, 3
      %s196 = scalar_select %p195, %s194, 3
      %s197 = smul.addr %s196, 8
      %s198 = scalar_lea.vmem %s0, %s197
      %p199 = pneg %p37
      %p200 = pneg %p34
      %p201 = pneg %p58
      %p202 = pneg %p55
      %p203 = pneg %p79
      %p204 = pneg %p76
      %p205 = pneg %p100
      %p206 = pneg %p97
      %p207 = pneg %p121
      %p208 = pneg %p118
      %p209 = pneg %p147
      %p210 = pneg %p144
      %s211 = smul.u32 2, %s16
      %p212 = scmp.lt.s32.totalorder %s211, 3
      %s213 = scalar_select %p212, %s211, 3
      %s214 = smul.addr %s213, 8
      %s215 = scalar_lea.vmem %s5, %s214
      %s216 = smul.u32 2, %s16
      %p217 = scmp.lt.s32.totalorder %s216, 3
      %s218 = scalar_select %p217, %s216, 3
      %s219 = smul.addr %s218, 8
      %s220 = scalar_lea.vmem %s0, %s219
      %s221 = smul.u32 2, %s16
      %s222 = smul.u32 2, %s16
      %p223 = scmp.lt.s32.totalorder %s222, 3
      %s224 = scalar_select %p223, %s222, 3
      %s225 = smul.addr %s224, 8
      %s226 = scalar_lea.vmem %s5, %s225
      %s227 = smul.u32 2, %s16
      %v228 = vld [vmem:[%s1] sm:$0xff]
      %v229 = vld [vmem:[%s1 + $0x8] sm:$0xff]
      %v230 = vld [vmem:[%s220] sm:$0xff]
      %v231 = vld [vmem:[%s220 + $0x8] sm:$0xff]
      %232 = vrot.lane.b32.xlu0 %v230, 17
      %v233 = vpop.permute.xlu0 %232
      %234 = vrot.lane.b32.xlu0 %v231, 17
      %v235 = vpop.permute.xlu0 %234
      %v236 = vlaneseq
      %v237 = vand.u32 %v236, 127
      %vm238 = vcmp.lt.s32.totalorder %v237, 17
      %v239 = vsel %vm238, %v233, %v235
      %v240 = vsel %vm238, %v235, %v233
      %v241 = vlaneseq
      %v242 = vshrl.u32 %v241, 7
      %v243 = vsub.s32 0, %v242
      %v244 = vrot.slane %v228, %v243
      %v245 = vlaneseq
      %v246 = vshrl.u32 %v245, 7
      %v247 = vsub.s32 0, %v246
      %v248 = vrot.slane %v229, %v247
      %v249 = vmul.f32 %v240, %v244
      %v250 = vmul.f32 %v239, %v248
      %251 = vrot.lane.b32.xlu0 %v230, 16
      %v252 = vpop.permute.xlu0 %251
      %253 = vrot.lane.b32.xlu0 %v231, 16
      %v254 = vpop.permute.xlu0 %253
      %vm255 = vcmp.lt.s32.totalorder %v237, 16
      %v256 = vsel %vm255, %v252, %v254
      %v257 = vsel %vm255, %v254, %v252
      %v258 = vlaneseq
      %v259 = vshrl.u32 %v258, 7
      %v260 = vsub.s32 1, %v259
      %v261 = vrot.slane %v228, %v260
      %v262 = vlaneseq
      %v263 = vshrl.u32 %v262, 7
      %v264 = vsub.s32 1, %v263
      %v265 = vrot.slane %v229, %v264
      %v266 = vmul.f32 %v257, %v261
      %v267 = vmul.f32 %v256, %v265
      %268 = vrot.lane.b32.xlu0 %v230, 15
      %v269 = vpop.permute.xlu0 %268
      %270 = vrot.lane.b32.xlu0 %v231, 15
      %v271 = vpop.permute.xlu0 %270
      %vm272 = vcmp.lt.s32.totalorder %v237, 15
      %v273 = vsel %vm272, %v269, %v271
      %v274 = vsel %vm272, %v271, %v269
      %v275 = vlaneseq
      %v276 = vshrl.u32 %v275, 7
      %v277 = vsub.s32 2, %v276
      %v278 = vrot.slane %v228, %v277
      %v279 = vlaneseq
      %v280 = vshrl.u32 %v279, 7
      %v281 = vsub.s32 2, %v280
      %v282 = vrot.slane %v229, %v281
      %v283 = vmul.f32 %v274, %v278
      %v284 = vmul.f32 %v273, %v282
      %285 = vrot.lane.b32.xlu0 %v230, 1
      %v286 = vpop.permute.xlu0 %285
      %287 = vrot.lane.b32.xlu0 %v231, 1
      %v288 = vpop.permute.xlu0 %287
      %vm289 = vcmp.lt.s32.totalorder %v237, 1
      %v290 = vsel %vm289, %v286, %v288
      %v291 = vsel %vm289, %v288, %v286
      %v292 = vlaneseq
      %v293 = vshrl.u32 %v292, 7
      %v294 = vsub.s32 3, %v293
      %v295 = vrot.slane %v228, %v294
      %v296 = vlaneseq
      %v297 = vshrl.u32 %v296, 7
      %v298 = vsub.s32 3, %v297
      %v299 = vrot.slane %v229, %v298
      %v300 = vmul.f32 %v291, %v295
      %v301 = vmul.f32 %v290, %v299
      %302 = vrot.lane.b32.xlu0 %v230, 127
      %v303 = vpop.permute.xlu0 %302
      %304 = vrot.lane.b32.xlu0 %v231, 127
      %v305 = vpop.permute.xlu0 %304
      %vm306 = vcmp.lt.s32.totalorder %v237, 127
      %v307 = vsel %vm306, %v303, %v305
      %v308 = vsel %vm306, %v305, %v303
      %v309 = vlaneseq
      %v310 = vshrl.u32 %v309, 7
      %v311 = vsub.s32 4, %v310
      %v312 = vrot.slane %v228, %v311
      %v313 = vlaneseq
      %v314 = vshrl.u32 %v313, 7
      %v315 = vsub.s32 4, %v314
      %v316 = vrot.slane %v229, %v315
      %v317 = vmul.f32 %v307, %v312
      %v318 = vmul.f32 %v308, %v316
      %319 = vrot.lane.b32.xlu0 %v230, 113
      %v320 = vpop.permute.xlu0 %319
      %321 = vrot.lane.b32.xlu0 %v231, 113
      %v322 = vpop.permute.xlu0 %321
      %vm323 = vcmp.lt.s32.totalorder %v237, 113
      %v324 = vsel %vm323, %v320, %v322
      %v325 = vsel %vm323, %v322, %v320
      %v326 = vlaneseq
      %v327 = vshrl.u32 %v326, 7
      %v328 = vsub.s32 5, %v327
      %v329 = vrot.slane %v228, %v328
      %v330 = vlaneseq
      %v331 = vshrl.u32 %v330, 7
      %v332 = vsub.s32 5, %v331
      %v333 = vrot.slane %v229, %v332
      %v334 = vmul.f32 %v324, %v329
      %v335 = vmul.f32 %v325, %v333
      %336 = vrot.lane.b32.xlu0 %v230, 112
      %v337 = vpop.permute.xlu0 %336
      %338 = vrot.lane.b32.xlu0 %v231, 112
      %v339 = vpop.permute.xlu0 %338
      %vm340 = vcmp.lt.s32.totalorder %v237, 112
      %v341 = vsel %vm340, %v337, %v339
      %v342 = vsel %vm340, %v339, %v337
      %v343 = vlaneseq
      %v344 = vshrl.u32 %v343, 7
      %v345 = vsub.s32 6, %v344
      %v346 = vrot.slane %v228, %v345
      %v347 = vlaneseq
      %v348 = vshrl.u32 %v347, 7
      %v349 = vsub.s32 6, %v348
      %v350 = vrot.slane %v229, %v349
      %v351 = vmul.f32 %v341, %v346
      %v352 = vmul.f32 %v342, %v350
      %353 = vrot.lane.b32.xlu0 %v230, 111
      %v354 = vpop.permute.xlu0 %353
      %355 = vrot.lane.b32.xlu0 %v231, 111
      %v356 = vpop.permute.xlu0 %355
      %vm357 = vcmp.lt.s32.totalorder %v237, 111
      %v358 = vsel %vm357, %v354, %v356
      %v359 = vsel %vm357, %v356, %v354
      %v360 = vlaneseq
      %v361 = vshrl.u32 %v360, 7
      %v362 = vsub.s32 7, %v361
      %v363 = vrot.slane %v228, %v362
      %v364 = vlaneseq
      %v365 = vshrl.u32 %v364, 7
      %v366 = vsub.s32 7, %v365
      %v367 = vrot.slane %v229, %v366
      %v368 = vmul.f32 %v358, %v363
      %v369 = vmul.f32 %v359, %v367
      %v370 = vld [vmem:[%s2] sm:$0xff]
      %v371 = vld [vmem:[%s2 + $0x8] sm:$0xff]
      %v372 = vld [vmem:[%s4] sm:$0xff]
      %v373 = vld [vmem:[%s4 + $0x8] sm:$0xff]
      %375 = vset.pattern.permute.xlu0 0
      %376 = vperm.xlu0 %375, %v372
      %v377 = vpop.permute.xlu0 %376
      %380 = vset.pattern.permute.xlu0 0
      %381 = vperm.xlu0 %380, %v373
      %v382 = vpop.permute.xlu0 %381
      %vm384 = vcmask 588800
      %v386 = vsel %vm384, %v370, 0
      %v389 = vsel %vm384, %v371, 0
      %391 = vmatprep.subr.mxu0 %v250
      %392 = vmatpush1.msra.mxu0 %v249
      %393 = vmatprep.subr.mxu0 %v267
      %394 = vmatpush1.msra.mxu0 %v266
      %395 = vmatprep.subr.mxu0 %v284
      %396 = vmatpush1.msra.mxu0 %v283
      %397 = vmatprep.subr.mxu0 %v301
      %398 = vmatpush1.msra.mxu0 %v300
      %399 = vmatprep.subr.mxu0 %v231
      %400 = vmatpush1.msra.mxu0 %v230
      %401 = vmatprep.subr.mxu0 %v318
      %402 = vmatpush1.msra.mxu0 %v317
      %403 = vmatprep.subr.mxu0 %v335
      %404 = vmatpush1.msra.mxu0 %v334
      %405 = vmatprep.subr.mxu0 %v352
      %406 = vmatpush1.msra.mxu0 %v351
      %407 = vmatprep.subr.mxu0 %v369
      %408 = vmatpush1.msra.mxu0 %v368
      %409 = vmatprep.subr.mxu0 0.0
      %410 = vmatpush1.msra.mxu0 0.0
      %411 = vmatprep.subr.mxu0 0.0
      %412 = vmatpush1.msra.mxu0 0.0
      %413 = vmatprep.subr.mxu0 0.0
      %414 = vmatpush1.msra.mxu0 0.0
      %415 = vmatprep.subr.mxu0 0.0
      %416 = vmatpush1.msra.mxu0 0.0
      %417 = vmatprep.subr.mxu0 0.0
      %418 = vmatpush1.msra.mxu0 0.0
      %419 = vmatprep.subr.mxu0 0.0
      %420 = vmatpush1.msra.mxu0 0.0
      %421 = vmatprep.subr.mxu0 0.0
      %422 = vmatpush1.msra.mxu0 0.0
      %423 = vmatprep.subr.mxu0 0.0
      %424 = vmatpush1.msra.mxu0 0.0
      %425 = vmatprep.subr.mxu0 0.0
      %426 = vmatpush1.msra.mxu0 0.0
      %427 = vmatprep.subr.mxu0 0.0
      %428 = vmatpush1.msra.mxu0 0.0
      %429 = vmatprep.subr.mxu0 0.0
      %430 = vmatpush1.msra.mxu0 0.0
      %431 = vmatprep.subr.mxu0 0.0
      %432 = vmatpush1.msra.mxu0 0.0
      %433 = vmatprep.subr.mxu0 0.0
      %434 = vmatpush1.msra.mxu0 0.0
      %435 = vmatprep.subr.mxu0 0.0
      %436 = vmatpush1.msra.mxu0 0.0
      %437 = vmatprep.subr.mxu0 0.0
      %438 = vmatpush1.msra.mxu0 0.0
      %439 = vmatprep.subr.mxu0 0.0
      %440 = vmatpush1.msra.mxu0 0.0
      %441 = vmatprep.subr.mxu0 0.0
      %442 = vmatpush1.msra.mxu0 0.0
      %443 = vmatprep.subr.mxu0 0.0
      %444 = vmatpush1.msra.mxu0 0.0
      %445 = vmatprep.subr.mxu0 0.0
      %446 = vmatpush1.msra.mxu0 0.0
      %447 = vmatprep.subr.mxu0 0.0
      %448 = vmatpush1.msra.mxu0 0.0
      %449 = vmatprep.subr.mxu0 0.0
      %450 = vmatpush1.msra.mxu0 0.0
      %451 = vmatprep.subr.mxu0 0.0
      %452 = vmatpush1.msra.mxu0 0.0
      %453 = vmatprep.subr.mxu0 0.0
      %454 = vmatpush1.msra.mxu0 0.0
      %455 = vmatprep.mubr.f32.mxu0 0.0
      %456 = vmatmul.mubr.f32.gmra.mrb[0].mxu0 %v386
      %v457 = vpop.f32.mrb[0].mxu0
      %v458 = vadd.f32 %v377, %v457
      %v459 = vpop.f32.mrb[0].mxu0
      %v460 = vadd.f32 %v377, %v459
      %461 = vmatprep.mubr.f32.mxu0 0.0
      %462 = vmatmul.mubr.f32.gmra.mrb[0].mxu0 %v389
      %v463 = vpop.f32.mrb[0].mxu0
      %v464 = vadd.f32 %v382, %v463
      %v465 = vpop.f32.mrb[0].mxu0
      %v466 = vadd.f32 %v382, %v465
      %467 = vdwg.mxu0
      %vm468 = vcmp.ge.f32.partialorder %v458, 0.0
      %vm469 = vcmp.ge.f32.partialorder %v460, 0.0
      %v470 = vmul.f32 %v458, 0.2
      %v471 = vmul.f32 %v460, 0.2
      %v472 = vsel %vm468, %v458, %v470
      %v473 = vsel %vm469, %v460, %v471
      %v474 = vadd.f32 %v472, %v473
      %475 = vadd.xlane.f32.xlu0 %v474
      %v476 = vpop.xlane.xlu0 %475
      %v477 = vrcp.pop 256.0
      %v478 = vmul.f32 %v476, %v477
      %v479 = vsub.f32 %v472, %v478
      %v480 = vsub.f32 %v473, %v478
      %v481 = vmul.f32 %v479, %v479
      %v482 = vmul.f32 %v480, %v480
      %v483 = vadd.f32 %v481, %v482
      %484 = vadd.xlane.f32.xlu0 %v483
      %v485 = vpop.xlane.xlu0 %484
      %v486 = vmul.f32 %v485, %v477
      %v487 = vadd.f32 %v486, 1e-05
      %v488 = vrsqrt.pop %v487
      %v489 = vmul.f32 %v479, %v488
      %v490 = vmul.f32 %v480, %v488
      %v491 = vld [vmem:[%s4] sm:$0xff]
      %493 = vset.pattern.permute.xlu0 1
      %494 = vperm.xlu0 %493, %v491
      %v495 = vpop.permute.xlu0 %494
      %v497 = vmul.f32 %v489, %v495
      %v498 = vmul.f32 %v490, %v495
      %499 = vset.pattern.permute.xlu0 2
      %500 = vperm.xlu0 %499, %v491
      %v501 = vpop.permute.xlu0 %500
      %v503 = vadd.f32 %v497, %v501
      %v504 = vadd.f32 %v498, %v501
      %v505 = vlaneseq
      %v506 = vshrl.u32 %v505, 7
      %vm507 = vcmp.lt.s32.totalorder %v506, 2
      %v508 = vsel %vm507, %v503, %v472
      %v509 = vsel %vm507, %v504, %v473
      %510 = vrot.lane.b32.xlu0 %v508, 17
      %v511 = vpop.permute.xlu0 %510
      %512 = vrot.lane.b32.xlu0 %v509, 17
      %v513 = vpop.permute.xlu0 %512
      %v514 = vsel %vm238, %v511, %v513
      %v515 = vsel %vm238, %v513, %v511
      %v516 = vmul.f32 %v515, %v244
      %v517 = vmul.f32 %v514, %v248
      %518 = vrot.lane.b32.xlu0 %v508, 16
      %v519 = vpop.permute.xlu0 %518
      %520 = vrot.lane.b32.xlu0 %v509, 16
      %v521 = vpop.permute.xlu0 %520
      %v522 = vsel %vm255, %v519, %v521
      %v523 = vsel %vm255, %v521, %v519
      %v524 = vmul.f32 %v523, %v261
      %v525 = vmul.f32 %v522, %v265
      %526 = vrot.lane.b32.xlu0 %v508, 15
      %v527 = vpop.permute.xlu0 %526
      %528 = vrot.lane.b32.xlu0 %v509, 15
      %v529 = vpop.permute.xlu0 %528
      %v530 = vsel %vm272, %v527, %v529
      %v531 = vsel %vm272, %v529, %v527
      %v532 = vmul.f32 %v531, %v278
      %v533 = vmul.f32 %v530, %v282
      %534 = vrot.lane.b32.xlu0 %v508, 1
      %v535 = vpop.permute.xlu0 %534
      %536 = vrot.lane.b32.xlu0 %v509, 1
      %v537 = vpop.permute.xlu0 %536
      %v538 = vsel %vm289, %v535, %v537
      %v539 = vsel %vm289, %v537, %v535
      %v540 = vmul.f32 %v539, %v295
      %v541 = vmul.f32 %v538, %v299
      %542 = vrot.lane.b32.xlu0 %v508, 127
      %v543 = vpop.permute.xlu0 %542
      %544 = vrot.lane.b32.xlu0 %v509, 127
      %v545 = vpop.permute.xlu0 %544
      %v546 = vsel %vm306, %v543, %v545
      %v547 = vsel %vm306, %v545, %v543
      %v548 = vmul.f32 %v546, %v312
      %v549 = vmul.f32 %v547, %v316
      %550 = vrot.lane.b32.xlu0 %v508, 113
      %v551 = vpop.permute.xlu0 %550
      %552 = vrot.lane.b32.xlu0 %v509, 113
      %v553 = vpop.permute.xlu0 %552
      %v554 = vsel %vm323, %v551, %v553
      %v555 = vsel %vm323, %v553, %v551
      %v556 = vmul.f32 %v554, %v329
      %v557 = vmul.f32 %v555, %v333
      %558 = vrot.lane.b32.xlu0 %v508, 112
      %v559 = vpop.permute.xlu0 %558
      %560 = vrot.lane.b32.xlu0 %v509, 112
      %v561 = vpop.permute.xlu0 %560
      %v562 = vsel %vm340, %v559, %v561
      %v563 = vsel %vm340, %v561, %v559
      %v564 = vmul.f32 %v562, %v346
      %v565 = vmul.f32 %v563, %v350
      %566 = vrot.lane.b32.xlu0 %v508, 111
      %v567 = vpop.permute.xlu0 %566
      %568 = vrot.lane.b32.xlu0 %v509, 111
      %v569 = vpop.permute.xlu0 %568
      %v570 = vsel %vm357, %v567, %v569
      %v571 = vsel %vm357, %v569, %v567
      %v572 = vmul.f32 %v570, %v363
      %v573 = vmul.f32 %v571, %v367
      %v574 = vld [vmem:[%s3] sm:$0xff]
      %575 = vset.pattern.permute.xlu0 3
      %576 = vperm.xlu0 %575, %v491
      %v577 = vpop.permute.xlu0 %576
      %v580 = vsel %vm384, %v574, 0
      %582 = vmatprep.subr.mxu0 %v517
      %583 = vmatpush1.msra.mxu0 %v516
      %584 = vmatprep.subr.mxu0 %v525
      %585 = vmatpush1.msra.mxu0 %v524
      %586 = vmatprep.subr.mxu0 %v533
      %587 = vmatpush1.msra.mxu0 %v532
      %588 = vmatprep.subr.mxu0 %v541
      %589 = vmatpush1.msra.mxu0 %v540
      %590 = vmatprep.subr.mxu0 %v509
      %591 = vmatpush1.msra.mxu0 %v508
      %592 = vmatprep.subr.mxu0 %v549
      %593 = vmatpush1.msra.mxu0 %v548
      %594 = vmatprep.subr.mxu0 %v557
      %595 = vmatpush1.msra.mxu0 %v556
      %596 = vmatprep.subr.mxu0 %v565
      %597 = vmatpush1.msra.mxu0 %v564
      %598 = vmatprep.subr.mxu0 %v573
      %599 = vmatpush1.msra.mxu0 %v572
      %600 = vmatprep.subr.mxu0 0.0
      %601 = vmatpush1.msra.mxu0 0.0
      %602 = vmatprep.subr.mxu0 0.0
      %603 = vmatpush1.msra.mxu0 0.0
      %604 = vmatprep.subr.mxu0 0.0
      %605 = vmatpush1.msra.mxu0 0.0
      %606 = vmatprep.subr.mxu0 0.0
      %607 = vmatpush1.msra.mxu0 0.0
      %608 = vmatprep.subr.mxu0 0.0
      %609 = vmatpush1.msra.mxu0 0.0
      %610 = vmatprep.subr.mxu0 0.0
      %611 = vmatpush1.msra.mxu0 0.0
      %612 = vmatprep.subr.mxu0 0.0
      %613 = vmatpush1.msra.mxu0 0.0
      %614 = vmatprep.subr.mxu0 0.0
      %615 = vmatpush1.msra.mxu0 0.0
      %616 = vmatprep.subr.mxu0 0.0
      %617 = vmatpush1.msra.mxu0 0.0
      %618 = vmatprep.subr.mxu0 0.0
      %619 = vmatpush1.msra.mxu0 0.0
      %620 = vmatprep.subr.mxu0 0.0
      %621 = vmatpush1.msra.mxu0 0.0
      %622 = vmatprep.subr.mxu0 0.0
      %623 = vmatpush1.msra.mxu0 0.0
      %624 = vmatprep.subr.mxu0 0.0
      %625 = vmatpush1.msra.mxu0 0.0
      %626 = vmatprep.subr.mxu0 0.0
      %627 = vmatpush1.msra.mxu0 0.0
      %628 = vmatprep.subr.mxu0 0.0
      %629 = vmatpush1.msra.mxu0 0.0
      %630 = vmatprep.subr.mxu0 0.0
      %631 = vmatpush1.msra.mxu0 0.0
      %632 = vmatprep.subr.mxu0 0.0
      %633 = vmatpush1.msra.mxu0 0.0
      %634 = vmatprep.subr.mxu0 0.0
      %635 = vmatpush1.msra.mxu0 0.0
      %636 = vmatprep.subr.mxu0 0.0
      %637 = vmatpush1.msra.mxu0 0.0
      %638 = vmatprep.subr.mxu0 0.0
      %639 = vmatpush1.msra.mxu0 0.0
      %640 = vmatprep.subr.mxu0 0.0
      %641 = vmatpush1.msra.mxu0 0.0
      %642 = vmatprep.subr.mxu0 0.0
      %643 = vmatpush1.msra.mxu0 0.0
      %644 = vmatprep.subr.mxu0 0.0
      %645 = vmatpush1.msra.mxu0 0.0
      %646 = vmatprep.mubr.f32.mxu0 0.0
      %647 = vmatmul.mubr.f32.gmra.mrb[0].mxu0 %v580
      %v648 = vpop.f32.mrb[0].mxu0
      %v649 = vadd.f32 %v577, %v648
      %v650 = vpop.f32.mrb[0].mxu0
      %v651 = vadd.f32 %v577, %v650
      %652 = vdwg.mxu0
      %vm653 = vcmp.ge.f32.partialorder %v649, 0.0
      %vm654 = vcmp.ge.f32.partialorder %v651, 0.0
      %v655 = vmul.f32 %v649, 0.2
      %v656 = vmul.f32 %v651, 0.2
      %v657 = vsel %vm653, %v649, %v655
      %v658 = vsel %vm654, %v651, %v656
      %v659 = vadd.f32 %v657, %v464
      %v660 = vadd.f32 %v658, %v466
      %661 = vst [vmem:[%s226] sm:$0xff] %v659
      %662 = vst [vmem:[%s226 + $0x8] sm:$0xff] %v660
      %s663 = smul.u32 2, %s16
      %p664 = scmp.lt.s32.totalorder %s663, 3
      %s665 = scalar_select %p664, %s663, 3
      %s666 = smul.addr %s665, 8
      %s667 = scalar_lea.vmem %s5, %s666
      // Predicated region
      $region41: #{hin_res_block.1} parent=39 // pred_check
        %p668 = pneg %p144
      $region42: #{hin_res_block.1} parent=39 // pred_check_branch
        %670 = sbr.rel (%p668) target = $region44
      $region43: #{hin_res_block.1} parent=39 // pred_region
        %s671 = smul.u32 2, %s16
      $region44: #{hin_res_block.1} parent=39 // pred_fallthru
        _
    $region40: #{hin_res_block.1} parent=5 // pred_fallthru
      _
    %p672 = scmp.le.s32.totalorder 2, %s11
    // Predicated region
    $region45: #{hin_res_block.1} parent=5 // pred_check
      %p673 = pneg %p672
    $region46: #{hin_res_block.1} parent=5 // pred_check_branch
      %675 = sbr.rel (%p673) target = $region48
    $region47: #{hin_res_block.1} parent=5 // pred_region
      %s676 = ssub.s32 %s11, 2
      // Predicated region
      $region49: #{hin_res_block.1} parent=47 // pred_check
        %p677 = pneg %p150
      $region50: #{hin_res_block.1} parent=47 // pred_check_branch
        %679 = sbr.rel (%p677) target = $region52
      $region51: #{hin_res_block.1} parent=47 // pred_region
        %s680 = smul.u32 2, %s17
        %p681 = scmp.lt.s32.totalorder %s680, 3
        %s682 = scalar_select %p681, %s680, 3
        %s683 = smul.addr %s682, 8
        %s684 = scalar_lea.vmem %s5, %s683
      $region52: #{hin_res_block.1} parent=47 // pred_fallthru
        _
    $region48: #{hin_res_block.1} parent=5 // pred_fallthru
      _
  $region6: #{hin_res_block.1} parent=0 // loop_footer
    %s15 = sadd.s32 1, %s11
  $region7: #{hin_res_block.1} parent=0 // loop_footer_branch
    %10 = sbr.rel target = $region3
  $region8: #{hin_res_block.1} parent=0 // loop_exit
    _

</llo_original>
